<compile_context>
chip_gen: v5e
topology: v5e:2x2
jax: 0.10.0
libtpu: 0.0.40
codegen_flags: <defaults>
</compile_context>

<pallas_src>
import functools

import jax
import jax.numpy as jnp
from jax import lax
from jax.experimental import pallas as pl
from jax.experimental.pallas import tpu as pltpu


# --------------------------------------------------------------------------
# Pallas kernel: one grid step == one (batch tile, time tile)
# --------------------------------------------------------------------------
def _cpc_tile_kernel(mce_ref, bcur_ref, bnext_ref, mask_ref, neg_ref, out_ref,
                     *, total_len, batch_size):
    # mce_ref   : (K, tb, tt, E)  mapped ctx embeddings (all forward steps)
    # bcur_ref  : (tb, tt, E)     base embeddings, current time tile
    # bnext_ref : (tb, tt, E)     base embeddings, next time tile (clamped)
    # mask_ref  : (tb, tt, 1)     sequence-length mask
    # neg_ref   : (tb, N, E)      per-row sampled negative embeddings
    # out_ref   : (1, 1, 1)       accumulated (already normalised) loss partial
    t_tile = pl.program_id(1)
    K, tb, tt, E = mce_ref.shape
    T = total_len

    @pl.when(t_tile == 0)
    def _init():
        out_ref[...] = jnp.zeros_like(out_ref)

    mask = mask_ref[...].astype(jnp.float32)            # (tb, tt, 1)
    bcur = bcur_ref[...].astype(jnp.float32)            # (tb, tt, E)
    bnext = bnext_ref[...].astype(jnp.float32)          # (tb, tt, E)
    negs = neg_ref[...].astype(jnp.float32)             # (tb, N, E)

    # global time index of every row in this tile
    g_t = t_tile * tt + lax.broadcasted_iota(jnp.int32, (tb, tt), 1)

    acc = jnp.float32(0.0)
    for s in range(K):                                  # K small & static -> unrolled
        shift = s + 1
        # trimmed mce slice for forward step s
        ce = mce_ref[s].astype(jnp.float32) * mask      # (tb, tt, E)
        # "future" base rows [t0+shift, t0+shift+tt): static concat of the
        # current and next tiles (shift <= tt); wrapped tail is masked below.
        be = jnp.concatenate([bcur[:, shift:, :], bnext[:, :shift, :]], axis=1)

        # positive logits <ce_t, base_{t+shift}>
        pos = jnp.sum(ce * be, axis=-1)                 # (tb, tt)
        # negative logits ce @ negs^T on the MXU
        neg = jnp.einsum("bte,bne->btn", ce, negs,
                         preferred_element_type=jnp.float32)   # (tb, tt, N)

        # -log_softmax([pos, neg])[..., 0] == logsumexp([pos, neg]) - pos
        m = jnp.maximum(pos, jnp.max(neg, axis=-1))     # (tb, tt)
        lse = m + jnp.log(jnp.exp(pos - m) +
                          jnp.sum(jnp.exp(neg - m[..., None]), axis=-1))
        row_loss = lse - pos                            # (tb, tt)

        # only positions t < T - shift enter step i's mean over B*(T - shift);
        # fold the (static) per-step normalisation in right here.
        valid = g_t < (T - shift)
        scale = 1.0 / (K * batch_size * (T - shift))
        acc = acc + jnp.sum(jnp.where(valid, row_loss, 0.0)) * scale

    out_ref[...] = out_ref[...] + acc


# --------------------------------------------------------------------------
# tiling heuristics
# --------------------------------------------------------------------------
def _largest_divisor(n, upper):
    for c in range(max(1, min(n, upper)), 0, -1):
        if n % c == 0:
            return c
    return 1


def _pick_time_tile(T, K, max_tile=512):
    # biggest divisor of T that is sublane-friendly (multiple of 8 or == T),
    # at least K and at most max_tile; fall back to the full axis.
    for c in range(min(T, max_tile), 0, -1):
        if T % c == 0 and c >= K and (c % 8 == 0 or c == T):
            return c
    return T


# --------------------------------------------------------------------------
# Wrapper == CPC_Loss.forward
# --------------------------------------------------------------------------
def cpc_loss(base, mce, seq_lens, *, n_negatives, key,
             time_tile=None, batch_tile=None):
    B, T, E = base.shape
    K = mce.shape[-1]
    assert mce.shape == (B, T, E, K)
    assert K < T, "n_forward_steps must be < max_seq_len (else torch mean is empty)"
    N = n_negatives

    # len_mask, identical to the torch code
    len_mask = (jnp.arange(T)[None, :] < seq_lens[:, None]).astype(jnp.float32)

    # torch.multinomial(mask, n_negatives) without replacement over the
    # flattened len_mask -> Gumbel top-k per batch row (distributionally
    # equivalent, not bit-identical to the torch RNG stream).
    flat_mask = len_mask.reshape(-1)                          # (B*T,)
    g = jax.random.gumbel(key, (B, B * T), dtype=jnp.float32)
    scores = jnp.where(flat_mask[None, :] > 0, g, -jnp.inf)
    _, sample_ids = lax.top_k(scores, N)                      # (B, N)
    neg_samples = base.reshape(B * T, E)[sample_ids]          # (B, N, E)

    # layout glue: (B,T,E,K) -> (K,B,T,E) so E is lane-dense; allow_input_fusion
    # below lets XLA fuse this transpose into the kernel input DMA.
    # TODO(synk): have the upstream producer emit (K,B,T,E) directly.
    mce_t = jnp.transpose(mce, (3, 0, 1, 2))

    # tiling
    tt = time_tile if time_tile is not None else _pick_time_tile(T, K)
    tb = batch_tile if batch_tile is not None else _largest_divisor(
        B, max(1, min(8, B // 2)))
    assert T % tt == 0 and B % tb == 0 and K <= tt
    NB, NT = B // tb, T // tt

    kernel = functools.partial(_cpc_tile_kernel, total_len=T, batch_size=B)

    grid_spec = pltpu.PrefetchScalarGridSpec(
        num_scalar_prefetch=0,
        grid=(NB, NT),
        in_specs=[
            pl.BlockSpec((K, tb, tt, E), lambda b, t: (0, b, t, 0)),   # mce
            pl.BlockSpec((tb, tt, E), lambda b, t: (b, t, 0)),         # base (cur tile)
            pl.BlockSpec((tb, tt, E),                                  # base (next tile)
                         lambda b, t: (b, jnp.minimum(t + 1, NT - 1), 0)),
            pl.BlockSpec((tb, tt, 1), lambda b, t: (b, t, 0)),         # len mask
            pl.BlockSpec((tb, N, E), lambda b, t: (b, 0, 0)),          # negatives
        ],
        out_specs=pl.BlockSpec((1, 1, 1), lambda b, t: (b, 0, 0)),
    )

    # VMEM budget: double-buffered inputs + headroom, capped for v7x's 64 MiB.
    blk_bytes = (K * tb * tt * E * mce.dtype.itemsize
                 + 2 * tb * tt * E * base.dtype.itemsize
                 + tb * tt * 4
                 + tb * N * E * neg_samples.dtype.itemsize)
    vmem_limit = int(min(64 * 2**20, max(32 * 2**20, 3 * blk_bytes)))

    partials = pl.pallas_call(
        kernel,
        out_shape=jax.ShapeDtypeStruct((NB, 1, 1), jnp.float32),
        grid_spec=grid_spec,
        compiler_params=pltpu.CompilerParams(
            dimension_semantics=("parallel", "arbitrary"),
            vmem_limit_bytes=vmem_limit,
            allow_input_fusion=[True, False, False, False, False],
        ),
    )(mce_t, base, base, len_mask[..., None], neg_samples)

    # per-batch-tile partials are already scaled by 1/(K*B*(T-i)); just sum.
    loss = jnp.sum(partials)
    return loss, neg_samples          # negatives returned for the reference check


# --------------------------------------------------------------------------
# Pure-JAX reference (same negatives), mirrors the torch module exactly
# --------------------------------------------------------------------------
def cpc_loss_ref(base, mce, seq_lens, neg_samples):
    B, T, E = base.shape
    K = mce.shape[-1]
    len_mask = (jnp.arange(T)[None, :] < seq_lens[:, None]).astype(jnp.float32)
    trimmed = mce * len_mask[:, :, None, None]
    losses = []
    for i in range(1, K + 1):
        ce = trimmed[:, :T - i, :, i - 1]                    # (B, T-i, E)
        be = base[:, i:]                                     # (B, T-i, E)
        pos = jnp.sum(ce * be, axis=-1)                      # (B, T-i)
        neg = jnp.einsum("bte,bne->btn", ce, neg_samples)    # (B, T-i, N)
        logits = jnp.concatenate([pos[..., None], neg], axis=-1)
        lsm = jax.nn.log_softmax(logits, axis=-1)[..., 0]
        losses.append(-jnp.mean(lsm))
    return jnp.mean(jnp.stack(losses))


if __name__ == "__main__":
    # small shapes consistent with the module's forward
    B, T, E, K, N = 2, 16, 32, 3, 8   # batch, max_seq_len, emb, n_forward_steps, n_negatives

    key = jax.random.PRNGKey(0)
    k_base, k_mce, k_neg = jax.random.split(key, 3)

    base = jax.random.normal(k_base, (B, T, E), dtype=jnp.float32)
    mce = jax.random.normal(k_mce, (B, T, E, K), dtype=jnp.float32)
    seq_lens = jnp.array([16, 9], dtype=jnp.int32)

    # run 1: default tiling (single time tile per batch row)
    loss_a, negs = jax.jit(functools.partial(cpc_loss, n_negatives=N))(
        base, mce, seq_lens, key=k_neg)
    # run 2: explicit multi-tile path (exercises cur/next-tile shift logic)
    loss_b, _ = jax.jit(functools.partial(
        cpc_loss, n_negatives=N, time_tile=8, batch_tile=1))(
        base, mce, seq_lens, key=k_neg)

    loss_a, loss_b = jax.block_until_ready((loss_a, loss_b))

    ref = cpc_loss_ref(base, mce, seq_lens, negs)
    assert jnp.allclose(loss_a, ref, rtol=1e-4, atol=1e-5), (loss_a, ref)
    assert jnp.allclose(loss_b, ref, rtol=1e-4, atol=1e-5), (loss_b, ref)

    print("KERNEL_OK")
</pallas_src>

<mosaic_0001>
module attributes {stable_mosaic.version = 11 : i64} {
  func.func @_cpc_tile_kernel(%arg0: i32, %arg1: i32, %arg2: memref<3x1x16x32xf32, #tpu.memory_space<vmem>>, %arg3: memref<1x16x32xf32, #tpu.memory_space<vmem>>, %arg4: memref<1x16x32xf32, #tpu.memory_space<vmem>>, %arg5: memref<1x16x1xf32, #tpu.memory_space<vmem>>, %arg6: memref<1x8x32xf32, #tpu.memory_space<vmem>>, %arg7: memref<1x1x1xf32, #tpu.memory_space<vmem>>) attributes {dimension_semantics = [#tpu.dimension_semantics<parallel>, #tpu.dimension_semantics<arbitrary>], iteration_bounds = array<i64: 2, 1>, scalar_prefetch = 0 : i64, scratch_operands = 0 : i64, tpu.core_type = #tpu.core_type<tc>, window_params = [{transform_indices = @transform_0, window_bounds = array<i64: 3, 1, 16, 32>}, {transform_indices = @transform_1, window_bounds = array<i64: 1, 16, 32>}, {transform_indices = @transform_2, window_bounds = array<i64: 1, 16, 32>}, {transform_indices = @transform_3, window_bounds = array<i64: 1, 16, 1>}, {transform_indices = @transform_4, window_bounds = array<i64: 1, 8, 32>}, {transform_indices = @transform_5, window_bounds = array<i64: 1, 1, 1>}]} {
    %c0_i32 = arith.constant 0 : i32
    %0 = arith.cmpi eq, %arg1, %c0_i32 : i32
    %1 = arith.extui %0 : i1 to i32
    %c0_i32_0 = arith.constant 0 : i32
    %2 = arith.cmpi ne, %1, %c0_i32_0 : i32
    scf.if %2 {
      %cst_49 = arith.constant 0.000000e+00 : f32
      %114 = vector.broadcast %cst_49 : f32 to vector<1x1x1xf32>
      %c0_50 = arith.constant 0 : index
      %c0_51 = arith.constant 0 : index
      %c0_52 = arith.constant 0 : index
      %115 = vector.load %arg7[%c0_50, %c0_51, %c0_52] : memref<1x1x1xf32, #tpu.memory_space<vmem>>, vector<1x1x1xf32>
      tpu.vector_store %arg7[%c0_50, %c0_51, %c0_52], %114 {strides = array<i32>} : memref<1x1x1xf32, #tpu.memory_space<vmem>>, vector<1x1x1xf32>,
    } else {
    }
    %c0 = arith.constant 0 : index
    %c0_1 = arith.constant 0 : index
    %c0_2 = arith.constant 0 : index
    %3 = vector.load %arg5[%c0, %c0_1, %c0_2] : memref<1x16x1xf32, #tpu.memory_space<vmem>>, vector<1x16x1xf32>
    %c0_3 = arith.constant 0 : index
    %c0_4 = arith.constant 0 : index
    %c0_5 = arith.constant 0 : index
    %4 = vector.load %arg3[%c0_3, %c0_4, %c0_5] : memref<1x16x32xf32, #tpu.memory_space<vmem>>, vector<1x16x32xf32>
    %c0_6 = arith.constant 0 : index
    %c0_7 = arith.constant 0 : index
    %c0_8 = arith.constant 0 : index
    %5 = vector.load %arg4[%c0_6, %c0_7, %c0_8] : memref<1x16x32xf32, #tpu.memory_space<vmem>>, vector<1x16x32xf32>
    %c0_9 = arith.constant 0 : index
    %c0_10 = arith.constant 0 : index
    %c0_11 = arith.constant 0 : index
    %6 = vector.load %arg6[%c0_9, %c0_10, %c0_11] : memref<1x8x32xf32, #tpu.memory_space<vmem>>, vector<1x8x32xf32>
    %c16_i32 = arith.constant 16 : i32
    %7 = arith.muli %arg1, %c16_i32 : i32
    %8 = tpu.iota {dimensions = array<i32: 1>} : vector<1x16xi32>
    %9 = vector.broadcast %7 : i32 to vector<1x16xi32>
    %10 = arith.addi %9, %8 : vector<1x16xi32>
    %c0_12 = arith.constant 0 : index
    %c0_13 = arith.constant 0 : index
    %c0_14 = arith.constant 0 : index
    %c0_15 = arith.constant 0 : index
    %11 = vector.load %arg2[%c0_12, %c0_13, %c0_14, %c0_15] : memref<3x1x16x32xf32, #tpu.memory_space<vmem>>, vector<1x1x16x32xf32>
    %12 = vector.shape_cast %11 : vector<1x1x16x32xf32> to vector<1x16x32xf32>
    %13 = vector.broadcast %3 : vector<1x16x1xf32> to vector<1x16x32xf32>
    %14 = arith.mulf %12, %13 : vector<1x16x32xf32>
    %15 = vector.extract_strided_slice %4 {offsets = [0, 1, 0], sizes = [1, 15, 32], strides = [1, 1, 1]} : vector<1x16x32xf32> to vector<1x15x32xf32>
    %16 = vector.extract_strided_slice %5 {offsets = [0, 0, 0], sizes = [1, 1, 32], strides = [1, 1, 1]} : vector<1x16x32xf32> to vector<1x1x32xf32>
    %17 = tpu.concatenate %15, %16 in 1 : vector<1x15x32xf32>, vector<1x1x32xf32> -> vector<1x16x32xf32>
    %18 = arith.mulf %14, %17 : vector<1x16x32xf32>
    %cst = arith.constant dense<0.000000e+00> : vector<1x16xf32>
    %19 = vector.multi_reduction <add>, %18, %cst [2] : vector<1x16x32xf32> to vector<1x16xf32>
    "tpu.trace_start"() <{level = 10 : i32, message = "bte,bne->btn"}> : () -> ()
    %cst_16 = arith.constant dense<0.000000e+00> : vector<1x16x8xf32>
    %20 = tpu.matmul %14, %6, %cst_16 {dimension_numbers = #tpu.dot_dimension_numbers<[2], [2], [1], [1], [0, 0, 0, 1, 1, 1], [0], [0]>} : vector<1x16x32xf32>, vector<1x8x32xf32>, vector<1x16x8xf32> -> vector<1x16x8xf32>
    "tpu.trace_stop"() : () -> ()
    %cst_17 = arith.constant dense<0xFF800000> : vector<1x16xf32>
    %21 = vector.multi_reduction <maximumf>, %20, %cst_17 [2] : vector<1x16x8xf32> to vector<1x16xf32>
    %22 = arith.maximumf %19, %21 : vector<1x16xf32>
    %23 = arith.subf %19, %22 : vector<1x16xf32>
    %24 = math.exp %23 : vector<1x16xf32>
    %25 = vector.shape_cast %22 : vector<1x16xf32> to vector<1x16x1xf32>
    %26 = vector.broadcast %25 : vector<1x16x1xf32> to vector<1x16x8xf32>
    %27 = arith.subf %20, %26 : vector<1x16x8xf32>
    %28 = math.exp %27 : vector<1x16x8xf32>
    %cst_18 = arith.constant dense<0.000000e+00> : vector<1x16xf32>
    %29 = vector.multi_reduction <add>, %28, %cst_18 [2] : vector<1x16x8xf32> to vector<1x16xf32>
    %30 = arith.addf %24, %29 : vector<1x16xf32>
    %31 = math.log %30 : vector<1x16xf32>
    %32 = arith.addf %22, %31 : vector<1x16xf32>
    %33 = arith.subf %32, %19 : vector<1x16xf32>
    %c15_i32 = arith.constant 15 : i32
    %34 = vector.broadcast %c15_i32 : i32 to vector<1x16xi32>
    %35 = arith.cmpi slt, %10, %34 : vector<1x16xi32>
    %cst_19 = arith.constant 0.000000e+00 : f32
    %36 = vector.broadcast %cst_19 : f32 to vector<1x16xf32>
    %37 = arith.select %35, %33, %36 : vector<1x16xi1>, vector<1x16xf32>
    %38 = vector.shape_cast %37 : vector<1x16xf32> to vector<1x1x16xf32>
    %cst_20 = arith.constant dense<0.000000e+00> : vector<1xf32>
    %39 = vector.multi_reduction <add>, %38, %cst_20 [1, 2] : vector<1x1x16xf32> to vector<1xf32>
    %40 = vector.shape_cast %39 : vector<1xf32> to vector<1x1x1xf32>
    %41 = vector.extract %40[0, 0, 0] : f32 from vector<1x1x1xf32>
    %cst_21 = arith.constant 0.0111111114 : f32
    %42 = arith.mulf %41, %cst_21 : f32
    %cst_22 = arith.constant 0.000000e+00 : f32
    %43 = arith.addf %cst_22, %42 : f32
    %c1 = arith.constant 1 : index
    %c0_23 = arith.constant 0 : index
    %c0_24 = arith.constant 0 : index
    %c0_25 = arith.constant 0 : index
    %44 = vector.load %arg2[%c1, %c0_23, %c0_24, %c0_25] : memref<3x1x16x32xf32, #tpu.memory_space<vmem>>, vector<1x1x16x32xf32>
    %45 = vector.shape_cast %44 : vector<1x1x16x32xf32> to vector<1x16x32xf32>
    %46 = vector.broadcast %3 : vector<1x16x1xf32> to vector<1x16x32xf32>
    %47 = arith.mulf %45, %46 : vector<1x16x32xf32>
    %48 = vector.extract_strided_slice %4 {offsets = [0, 2, 0], sizes = [1, 14, 32], strides = [1, 1, 1]} : vector<1x16x32xf32> to vector<1x14x32xf32>
    %49 = vector.extract_strided_slice %5 {offsets = [0, 0, 0], sizes = [1, 2, 32], strides = [1, 1, 1]} : vector<1x16x32xf32> to vector<1x2x32xf32>
    %50 = tpu.concatenate %48, %49 in 1 : vector<1x14x32xf32>, vector<1x2x32xf32> -> vector<1x16x32xf32>
    %51 = arith.mulf %47, %50 : vector<1x16x32xf32>
    %cst_26 = arith.constant dense<0.000000e+00> : vector<1x16xf32>
    %52 = vector.multi_reduction <add>, %51, %cst_26 [2] : vector<1x16x32xf32> to vector<1x16xf32>
    "tpu.trace_start"() <{level = 10 : i32, message = "bte,bne->btn"}> : () -> ()
    %cst_27 = arith.constant dense<0.000000e+00> : vector<1x16x8xf32>
    %53 = tpu.matmul %47, %6, %cst_27 {dimension_numbers = #tpu.dot_dimension_numbers<[2], [2], [1], [1], [0, 0, 0, 1, 1, 1], [0], [0]>} : vector<1x16x32xf32>, vector<1x8x32xf32>, vector<1x16x8xf32> -> vector<1x16x8xf32>
    "tpu.trace_stop"() : () -> ()
    %cst_28 = arith.constant dense<0xFF800000> : vector<1x16xf32>
    %54 = vector.multi_reduction <maximumf>, %53, %cst_28 [2] : vector<1x16x8xf32> to vector<1x16xf32>
    %55 = arith.maximumf %52, %54 : vector<1x16xf32>
    %56 = arith.subf %52, %55 : vector<1x16xf32>
    %57 = math.exp %56 : vector<1x16xf32>
    %58 = vector.shape_cast %55 : vector<1x16xf32> to vector<1x16x1xf32>
    %59 = vector.broadcast %58 : vector<1x16x1xf32> to vector<1x16x8xf32>
    %60 = arith.subf %53, %59 : vector<1x16x8xf32>
    %61 = math.exp %60 : vector<1x16x8xf32>
    %cst_29 = arith.constant dense<0.000000e+00> : vector<1x16xf32>
    %62 = vector.multi_reduction <add>, %61, %cst_29 [2] : vector<1x16x8xf32> to vector<1x16xf32>
    %63 = arith.addf %57, %62 : vector<1x16xf32>
    %64 = math.log %63 : vector<1x16xf32>
    %65 = arith.addf %55, %64 : vector<1x16xf32>
    %66 = arith.subf %65, %52 : vector<1x16xf32>
    %c14_i32 = arith.constant 14 : i32
    %67 = vector.broadcast %c14_i32 : i32 to vector<1x16xi32>
    %68 = arith.cmpi slt, %10, %67 : vector<1x16xi32>
    %cst_30 = arith.constant 0.000000e+00 : f32
    %69 = vector.broadcast %cst_30 : f32 to vector<1x16xf32>
    %70 = arith.select %68, %66, %69 : vector<1x16xi1>, vector<1x16xf32>
    %71 = vector.shape_cast %70 : vector<1x16xf32> to vector<1x1x16xf32>
    %cst_31 = arith.constant dense<0.000000e+00> : vector<1xf32>
    %72 = vector.multi_reduction <add>, %71, %cst_31 [1, 2] : vector<1x1x16xf32> to vector<1xf32>
    %73 = vector.shape_cast %72 : vector<1xf32> to vector<1x1x1xf32>
    %74 = vector.extract %73[0, 0, 0] : f32 from vector<1x1x1xf32>
    %cst_32 = arith.constant 0.0119047621 : f32
    %75 = arith.mulf %74, %cst_32 : f32
    %76 = arith.addf %43, %75 : f32
    %c2 = arith.constant 2 : index
    %c0_33 = arith.constant 0 : index
    %c0_34 = arith.constant 0 : index
    %c0_35 = arith.constant 0 : index
    %77 = vector.load %arg2[%c2, %c0_33, %c0_34, %c0_35] : memref<3x1x16x32xf32, #tpu.memory_space<vmem>>, vector<1x1x16x32xf32>
    %78 = vector.shape_cast %77 : vector<1x1x16x32xf32> to vector<1x16x32xf32>
    %79 = vector.broadcast %3 : vector<1x16x1xf32> to vector<1x16x32xf32>
    %80 = arith.mulf %78, %79 : vector<1x16x32xf32>
    %81 = vector.extract_strided_slice %4 {offsets = [0, 3, 0], sizes = [1, 13, 32], strides = [1, 1, 1]} : vector<1x16x32xf32> to vector<1x13x32xf32>
    %82 = vector.extract_strided_slice %5 {offsets = [0, 0, 0], sizes = [1, 3, 32], strides = [1, 1, 1]} : vector<1x16x32xf32> to vector<1x3x32xf32>
    %83 = tpu.concatenate %81, %82 in 1 : vector<1x13x32xf32>, vector<1x3x32xf32> -> vector<1x16x32xf32>
    %84 = arith.mulf %80, %83 : vector<1x16x32xf32>
    %cst_36 = arith.constant dense<0.000000e+00> : vector<1x16xf32>
    %85 = vector.multi_reduction <add>, %84, %cst_36 [2] : vector<1x16x32xf32> to vector<1x16xf32>
    "tpu.trace_start"() <{level = 10 : i32, message = "bte,bne->btn"}> : () -> ()
    %cst_37 = arith.constant dense<0.000000e+00> : vector<1x16x8xf32>
    %86 = tpu.matmul %80, %6, %cst_37 {dimension_numbers = #tpu.dot_dimension_numbers<[2], [2], [1], [1], [0, 0, 0, 1, 1, 1], [0], [0]>} : vector<1x16x32xf32>, vector<1x8x32xf32>, vector<1x16x8xf32> -> vector<1x16x8xf32>
    "tpu.trace_stop"() : () -> ()
    %cst_38 = arith.constant dense<0xFF800000> : vector<1x16xf32>
    %87 = vector.multi_reduction <maximumf>, %86, %cst_38 [2] : vector<1x16x8xf32> to vector<1x16xf32>
    %88 = arith.maximumf %85, %87 : vector<1x16xf32>
    %89 = arith.subf %85, %88 : vector<1x16xf32>
    %90 = math.exp %89 : vector<1x16xf32>
    %91 = vector.shape_cast %88 : vector<1x16xf32> to vector<1x16x1xf32>
    %92 = vector.broadcast %91 : vector<1x16x1xf32> to vector<1x16x8xf32>
    %93 = arith.subf %86, %92 : vector<1x16x8xf32>
    %94 = math.exp %93 : vector<1x16x8xf32>
    %cst_39 = arith.constant dense<0.000000e+00> : vector<1x16xf32>
    %95 = vector.multi_reduction <add>, %94, %cst_39 [2] : vector<1x16x8xf32> to vector<1x16xf32>
    %96 = arith.addf %90, %95 : vector<1x16xf32>
    %97 = math.log %96 : vector<1x16xf32>
    %98 = arith.addf %88, %97 : vector<1x16xf32>
    %99 = arith.subf %98, %85 : vector<1x16xf32>
    %c13_i32 = arith.constant 13 : i32
    %100 = vector.broadcast %c13_i32 : i32 to vector<1x16xi32>
    %101 = arith.cmpi slt, %10, %100 : vector<1x16xi32>
    %cst_40 = arith.constant 0.000000e+00 : f32
    %102 = vector.broadcast %cst_40 : f32 to vector<1x16xf32>
    %103 = arith.select %101, %99, %102 : vector<1x16xi1>, vector<1x16xf32>
    %104 = vector.shape_cast %103 : vector<1x16xf32> to vector<1x1x16xf32>
    %cst_41 = arith.constant dense<0.000000e+00> : vector<1xf32>
    %105 = vector.multi_reduction <add>, %104, %cst_41 [1, 2] : vector<1x1x16xf32> to vector<1xf32>
    %106 = vector.shape_cast %105 : vector<1xf32> to vector<1x1x1xf32>
    %107 = vector.extract %106[0, 0, 0] : f32 from vector<1x1x1xf32>
    %cst_42 = arith.constant 0.012820513 : f32
    %108 = arith.mulf %107, %cst_42 : f32
    %109 = arith.addf %76, %108 : f32
    %c0_43 = arith.constant 0 : index
    %c0_44 = arith.constant 0 : index
    %c0_45 = arith.constant 0 : index
    %110 = vector.load %arg7[%c0_43, %c0_44, %c0_45] : memref<1x1x1xf32, #tpu.memory_space<vmem>>, vector<1x1x1xf32>
    %111 = vector.broadcast %109 : f32 to vector<1x1x1xf32>
    %112 = arith.addf %110, %111 : vector<1x1x1xf32>
    %c0_46 = arith.constant 0 : index
    %c0_47 = arith.constant 0 : index
    %c0_48 = arith.constant 0 : index
    %113 = vector.load %arg7[%c0_46, %c0_47, %c0_48] : memref<1x1x1xf32, #tpu.memory_space<vmem>>, vector<1x1x1xf32>
    tpu.vector_store %arg7[%c0_46, %c0_47, %c0_48], %112 {strides = array<i32>} : memref<1x1x1xf32, #tpu.memory_space<vmem>>, vector<1x1x1xf32>,
    return
  }
  func.func @transform_0(%arg0: i32, %arg1: i32) -> (i32, i32, i32, i32) {
    %c0_i32 = arith.constant 0 : i32
    %c0_i32_0 = arith.constant 0 : i32
    %c0_i32_1 = arith.constant 0 : i32
    return %c0_i32, %arg0, %arg1, %c0_i32_0 : i32, i32, i32, i32
  }
  func.func @transform_1(%arg0: i32, %arg1: i32) -> (i32, i32, i32) {
    %c0_i32 = arith.constant 0 : i32
    %c0_i32_0 = arith.constant 0 : i32
    return %arg0, %arg1, %c0_i32 : i32, i32, i32
  }
  func.func @transform_2(%arg0: i32, %arg1: i32) -> (i32, i32, i32) {
    %c1_i32 = arith.constant 1 : i32
    %0 = arith.addi %arg1, %c1_i32 : i32
    %c0_i32 = arith.constant 0 : i32
    %1 = arith.minsi %0, %c0_i32 : i32
    %c0_i32_0 = arith.constant 0 : i32
    %c0_i32_1 = arith.constant 0 : i32
    return %arg0, %1, %c0_i32_0 : i32, i32, i32
  }
  func.func @transform_3(%arg0: i32, %arg1: i32) -> (i32, i32, i32) {
    %c0_i32 = arith.constant 0 : i32
    %c0_i32_0 = arith.constant 0 : i32
    return %arg0, %arg1, %c0_i32 : i32, i32, i32
  }
  func.func @transform_4(%arg0: i32, %arg1: i32) -> (i32, i32, i32) {
    %c0_i32 = arith.constant 0 : i32
    %c0_i32_0 = arith.constant 0 : i32
    %c0_i32_1 = arith.constant 0 : i32
    return %arg0, %c0_i32, %c0_i32_0 : i32, i32, i32
  }
  func.func @transform_5(%arg0: i32, %arg1: i32) -> (i32, i32, i32) {
    %c0_i32 = arith.constant 0 : i32
    %c0_i32_0 = arith.constant 0 : i32
    %c0_i32_1 = arith.constant 0 : i32
    return %arg0, %c0_i32, %c0_i32_0 : i32, i32, i32
  }
}

</mosaic_0001>

<llo_original>
// kernel: cpc_loss.2
$region0: #{cpc_loss.2}
  #allocation0 [shape = 'u32[]', space=smem, size = 0x4, offset = 0x4, fixed_abs, tag = 'smem constant byte address 0x4 - core index']
  #allocation1 [shape = 'u32[72,128]{1,0:T(1,128)}', space=vmem, size = 0x9000, scoped, tag = 'internal scratch']
  %s0 = inlined_call_operand.vmem [shape: f32[2,16,32], index: 0, kind: input, shape index: {}]
  %s1 = inlined_call_operand.vmem [shape: f32[2,16,1], index: 1, kind: input, shape index: {}]
  %s2 = inlined_call_operand.vmem [shape: f32[2,8,32], index: 2, kind: input, shape index: {}]
  %s3 = inlined_call_operand.vmem [shape: f32[2,16,32,3], index: 3, kind: input, shape index: {}]
  %s4 = inlined_call_operand.vmem [shape: f32[2,1,1], index: 4, kind: output, shape index: {}]
  %s5 = sld [smem:[#allocation0]]
  $region57: #{cpc_loss.2} parent=0
    _
  %s7 = ssub.s32 1, %s5
  %s8 = scalar_select 0, %s7, %s5
  loop: start=0, step=1, limit=4
  $region2: #{cpc_loss.2} parent=0 // loop_pre_header
    _
  $region3: #{cpc_loss.2} parent=0 // loop_header
    %s10 = sphi 0, %s14
    %p11 = scmp.ge.s32.totalorder %s10, 4
    %s17 = sphi 0, %s29
    %s18 = sphi 0, %s25
    %s19 = sphi 0, %s17
    %s20 = sphi 0, %s18
    %s21 = sphi 0, %s19
    %s22 = sphi 0, %s20
    %s34 = sphi 0, %s36
    %s37 = sphi 0, %s34
    %s38 = sphi 0, %s37
    %s54 = sphi 0, %s38
    %s62 = sphi 0, %s64
    %s65 = sphi 0, %s62
    %s66 = sphi 0, %s65
    %s82 = sphi 0, %s66
    %s96 = sphi 0, %s98
    %s99 = sphi 0, %s96
    %s100 = sphi 0, %s99
    %s116 = sphi 0, %s100
    %s124 = sphi 0, %s126
    %s127 = sphi 0, %s124
    %s128 = sphi 0, %s127
    %s144 = sphi 0, %s128
    %s150 = sphi 0, %s152
    %s153 = sphi 0, %s150
    %s154 = sphi 0, %s153
    %s170 = sphi 0, %s154
    %s176 = sphi 0, %s178
    %s179 = sphi 0, %s176
    %s180 = sphi 0, %s179
    %s196 = sphi 0, %s180
  $region4: #{cpc_loss.2} parent=0 // loop_header_branch
    %13 = sbr.rel (%p11) target = $region8
  $region5: #{cpc_loss.2} parent=0 // loop_body
    %s15 = ssub.s32 %s10, 1
    %s16 = ssub.s32 %s10, 2
    %s23 = sadd.s32 1, %s18
    %p24 = scmp.ge.s32.totalorder %s23, 1
    %s25 = scalar_select %p24, 0, %s23
    %s26 = sadd.s32 1, %s17
    %s27 = scalar_select %p24, %s26, %s17
    %p28 = scmp.ge.s32.totalorder %s27, 2
    %s29 = scalar_select %p28, 0, %s27
    %s30 = ssub.s32 %s17, %s29
    %s31 = ssub.s32 %s18, %s25
    %s32 = sor.u32 %s30, %s31
    %p33 = scmp.eq.s32.totalorder %s32, 0
    %s35 = sadd.s32 %s34, 1
    %s36 = scalar_select %p33, %s34, %s35
    %p39 = pneg %p33
    %p40 = scmp.eq.s32.totalorder %s10, 1
    %p41 = por %p39, %p40
    %p42 = scmp.ne.s32.totalorder %s34, %s37
    %p43 = scmp.eq.s32.totalorder %s10, 0
    %p44 = por %p42, %p43
    %p45 = scmp.ne.s32.totalorder %s34, %s37
    %p46 = scmp.eq.s32.totalorder %s15, 1
    %p47 = por %p45, %p46
    %p48 = scmp.ne.s32.totalorder %s37, %s38
    %p49 = scmp.eq.s32.totalorder %s15, 0
    %p50 = por %p48, %p49
    %p51 = scmp.ne.s32.totalorder %s37, %s38
    %p52 = scmp.eq.s32.totalorder %s16, 1
    %p53 = por %p51, %p52
    %p55 = scmp.ne.s32.totalorder %s38, %s54
    %p56 = scmp.eq.s32.totalorder %s16, 0
    %p57 = por %p55, %p56
    %s58 = ssub.s32 %s17, %s29
    %s59 = ssub.s32 %s18, %s25
    %s60 = sor.u32 %s58, %s59
    %p61 = scmp.eq.s32.totalorder %s60, 0
    %s63 = sadd.s32 %s62, 1
    %s64 = scalar_select %p61, %s62, %s63
    %p67 = pneg %p61
    %p68 = scmp.eq.s32.totalorder %s10, 1
    %p69 = por %p67, %p68
    %p70 = scmp.ne.s32.totalorder %s62, %s65
    %p71 = scmp.eq.s32.totalorder %s10, 0
    %p72 = por %p70, %p71
    %p73 = scmp.ne.s32.totalorder %s62, %s65
    %p74 = scmp.eq.s32.totalorder %s15, 1
    %p75 = por %p73, %p74
    %p76 = scmp.ne.s32.totalorder %s65, %s66
    %p77 = scmp.eq.s32.totalorder %s15, 0
    %p78 = por %p76, %p77
    %p79 = scmp.ne.s32.totalorder %s65, %s66
    %p80 = scmp.eq.s32.totalorder %s16, 1
    %p81 = por %p79, %p80
    %p83 = scmp.ne.s32.totalorder %s66, %s82
    %p84 = scmp.eq.s32.totalorder %s16, 0
    %p85 = por %p83, %p84
    %s86 = sadd.s32 %s18, 1
    %p87 = scmp.lt.s32.totalorder %s86, 0
    %s88 = scalar_select %p87, %s86, 0
    %s89 = sadd.s32 %s25, 1
    %p90 = scmp.lt.s32.totalorder %s89, 0
    %s91 = scalar_select %p90, %s89, 0
    %s92 = ssub.s32 %s17, %s29
    %s93 = ssub.s32 %s88, %s91
    %s94 = sor.u32 %s92, %s93
    %p95 = scmp.eq.s32.totalorder %s94, 0
    %s97 = sadd.s32 %s96, 1
    %s98 = scalar_select %p95, %s96, %s97
    %p101 = pneg %p95
    %p102 = scmp.eq.s32.totalorder %s10, 1
    %p103 = por %p101, %p102
    %p104 = scmp.ne.s32.totalorder %s96, %s99
    %p105 = scmp.eq.s32.totalorder %s10, 0
    %p106 = por %p104, %p105
    %p107 = scmp.ne.s32.totalorder %s96, %s99
    %p108 = scmp.eq.s32.totalorder %s15, 1
    %p109 = por %p107, %p108
    %p110 = scmp.ne.s32.totalorder %s99, %s100
    %p111 = scmp.eq.s32.totalorder %s15, 0
    %p112 = por %p110, %p111
    %p113 = scmp.ne.s32.totalorder %s99, %s100
    %p114 = scmp.eq.s32.totalorder %s16, 1
    %p115 = por %p113, %p114
    %p117 = scmp.ne.s32.totalorder %s100, %s116
    %p118 = scmp.eq.s32.totalorder %s16, 0
    %p119 = por %p117, %p118
    %s120 = ssub.s32 %s17, %s29
    %s121 = ssub.s32 %s18, %s25
    %s122 = sor.u32 %s120, %s121
    %p123 = scmp.eq.s32.totalorder %s122, 0
    %s125 = sadd.s32 %s124, 1
    %s126 = scalar_select %p123, %s124, %s125
    %p129 = pneg %p123
    %p130 = scmp.eq.s32.totalorder %s10, 1
    %p131 = por %p129, %p130
    %p132 = scmp.ne.s32.totalorder %s124, %s127
    %p133 = scmp.eq.s32.totalorder %s10, 0
    %p134 = por %p132, %p133
    %p135 = scmp.ne.s32.totalorder %s124, %s127
    %p136 = scmp.eq.s32.totalorder %s15, 1
    %p137 = por %p135, %p136
    %p138 = scmp.ne.s32.totalorder %s127, %s128
    %p139 = scmp.eq.s32.totalorder %s15, 0
    %p140 = por %p138, %p139
    %p141 = scmp.ne.s32.totalorder %s127, %s128
    %p142 = scmp.eq.s32.totalorder %s16, 1
    %p143 = por %p141, %p142
    %p145 = scmp.ne.s32.totalorder %s128, %s144
    %p146 = scmp.eq.s32.totalorder %s16, 0
    %p147 = por %p145, %p146
    %s148 = ssub.s32 %s17, %s29
    %p149 = scmp.eq.s32.totalorder %s148, 0
    %s151 = sadd.s32 %s150, 1
    %s152 = scalar_select %p149, %s150, %s151
    %p155 = pneg %p149
    %p156 = scmp.eq.s32.totalorder %s10, 1
    %p157 = por %p155, %p156
    %p158 = scmp.ne.s32.totalorder %s150, %s153
    %p159 = scmp.eq.s32.totalorder %s10, 0
    %p160 = por %p158, %p159
    %p161 = scmp.ne.s32.totalorder %s150, %s153
    %p162 = scmp.eq.s32.totalorder %s15, 1
    %p163 = por %p161, %p162
    %p164 = scmp.ne.s32.totalorder %s153, %s154
    %p165 = scmp.eq.s32.totalorder %s15, 0
    %p166 = por %p164, %p165
    %p167 = scmp.ne.s32.totalorder %s153, %s154
    %p168 = scmp.eq.s32.totalorder %s16, 1
    %p169 = por %p167, %p168
    %p171 = scmp.ne.s32.totalorder %s154, %s170
    %p172 = scmp.eq.s32.totalorder %s16, 0
    %p173 = por %p171, %p172
    %s174 = ssub.s32 %s17, %s29
    %p175 = scmp.eq.s32.totalorder %s174, 0
    %s177 = sadd.s32 %s176, 1
    %s178 = scalar_select %p175, %s176, %s177
    %p181 = pneg %p175
    %p182 = scmp.eq.s32.totalorder %s10, 1
    %p183 = por %p181, %p182
    %p184 = scmp.ne.s32.totalorder %s176, %s179
    %p185 = scmp.eq.s32.totalorder %s10, 0
    %p186 = por %p184, %p185
    %p187 = scmp.ne.s32.totalorder %s176, %s179
    %p188 = scmp.eq.s32.totalorder %s15, 1
    %p189 = por %p187, %p188
    %p190 = scmp.ne.s32.totalorder %s179, %s180
    %p191 = scmp.eq.s32.totalorder %s15, 0
    %p192 = por %p190, %p191
    %p193 = scmp.ne.s32.totalorder %s179, %s180
    %p194 = scmp.eq.s32.totalorder %s16, 1
    %p195 = por %p193, %p194
    %p197 = scmp.ne.s32.totalorder %s180, %s196
    %p198 = scmp.eq.s32.totalorder %s16, 0
    %p199 = por %p197, %p198
    %p200 = scmp.le.s32.totalorder 1, %s10
    %p201 = scmp.lt.s32.totalorder %s10, 3
    %p202 = pnand %p200, %p201
    %p203 = pneg %p202
    // Predicated region
    $region9: #{cpc_loss.2} parent=5 // pred_check
      _
    $region10: #{cpc_loss.2} parent=5 // pred_check_branch
      %205 = sbr.rel (%p202) target = $region12
    $region11: #{cpc_loss.2} parent=5 // pred_region
      %s206 = ssub.s32 %s10, 1
    $region12: #{cpc_loss.2} parent=5 // pred_fallthru
      _
    %p207 = scmp.lt.s32.totalorder %s10, 2
    // Predicated region
    $region13: #{cpc_loss.2} parent=5 // pred_check
      %p208 = pneg %p207
    $region14: #{cpc_loss.2} parent=5 // pred_check_branch
      %210 = sbr.rel (%p208) target = $region16
    $region15: #{cpc_loss.2} parent=5 // pred_region
      // Predicated region
      $region17: #{cpc_loss.2} parent=15 // pred_check
        %p211 = pneg %p44
      $region18: #{cpc_loss.2} parent=15 // pred_check_branch
        %213 = sbr.rel (%p211) target = $region20
      $region19: #{cpc_loss.2} parent=15 // pred_region
        %s214 = smul.u32 2, %s18
        %p215 = scmp.lt.s32.totalorder %s17, 1
        %s216 = scalar_select %p215, %s17, 1
        %p217 = scmp.lt.s32.totalorder %s214, 1
        %s218 = scalar_select %p217, %s214, 1
        %s219 = smul.addr %s216, 2
        %s220 = sadd.s32 %s218, %s219
        %s221 = smul.addr %s220, 8
        %s222 = scalar_lea.vmem %s3, %s221
        %s223 = smul.u32 2, %s18
      $region20: #{cpc_loss.2} parent=15 // pred_fallthru
        _
      // Predicated region
      $region21: #{cpc_loss.2} parent=15 // pred_check
        %p224 = pneg %p72
      $region22: #{cpc_loss.2} parent=15 // pred_check_branch
        %226 = sbr.rel (%p224) target = $region24
      $region23: #{cpc_loss.2} parent=15 // pred_region
        %s227 = smul.u32 2, %s18
        %p228 = scmp.lt.s32.totalorder %s17, 1
        %s229 = scalar_select %p228, %s17, 1
        %p230 = scmp.lt.s32.totalorder %s227, 1
        %s231 = scalar_select %p230, %s227, 1
        %s232 = smul.addr %s229, 2
        %s233 = sadd.s32 %s231, %s232
        %s234 = smul.addr %s233, 8
        %s235 = scalar_lea.vmem %s0, %s234
        %s236 = smul.u32 2, %s18
      $region24: #{cpc_loss.2} parent=15 // pred_fallthru
        _
      // Predicated region
      $region25: #{cpc_loss.2} parent=15 // pred_check
        %p237 = pneg %p106
      $region26: #{cpc_loss.2} parent=15 // pred_check_branch
        %239 = sbr.rel (%p237) target = $region28
      $region27: #{cpc_loss.2} parent=15 // pred_region
        %s240 = sadd.s32 %s18, 1
        %p241 = scmp.lt.s32.totalorder %s240, 0
        %s242 = scalar_select %p241, %s240, 0
        %s243 = smul.u32 2, %s242
        %p244 = scmp.lt.s32.totalorder %s17, 1
        %s245 = scalar_select %p244, %s17, 1
        %p246 = scmp.lt.s32.totalorder %s243, 1
        %s247 = scalar_select %p246, %s243, 1
        %s248 = smul.addr %s245, 2
        %s249 = sadd.s32 %s247, %s248
        %s250 = smul.addr %s249, 8
        %s251 = scalar_lea.vmem %s0, %s250
        %s252 = sadd.s32 %s18, 1
        %p253 = scmp.lt.s32.totalorder %s252, 0
        %s254 = scalar_select %p253, %s252, 0
        %s255 = smul.u32 2, %s254
      $region28: #{cpc_loss.2} parent=15 // pred_fallthru
        _
      // Predicated region
      $region29: #{cpc_loss.2} parent=15 // pred_check
        %p256 = pneg %p134
      $region30: #{cpc_loss.2} parent=15 // pred_check_branch
        %258 = sbr.rel (%p256) target = $region32
      $region31: #{cpc_loss.2} parent=15 // pred_region
        %s259 = smul.u32 2, %s18
        %p260 = scmp.lt.s32.totalorder %s17, 1
        %s261 = scalar_select %p260, %s17, 1
        %p262 = scmp.lt.s32.totalorder %s259, 1
        %s263 = scalar_select %p262, %s259, 1
        %s264 = smul.addr %s261, 2
        %s265 = sadd.s32 %s263, %s264
        %s266 = smul.addr %s265, 8
        %s267 = scalar_lea.vmem %s1, %s266
        %s268 = smul.u32 2, %s18
      $region32: #{cpc_loss.2} parent=15 // pred_fallthru
        _
      // Predicated region
      $region33: #{cpc_loss.2} parent=15 // pred_check
        %p269 = pneg %p160
      $region34: #{cpc_loss.2} parent=15 // pred_check_branch
        %271 = sbr.rel (%p269) target = $region36
      $region35: #{cpc_loss.2} parent=15 // pred_region
        %p272 = scmp.lt.s32.totalorder %s17, 1
        %s273 = scalar_select %p272, %s17, 1
        %s274 = smul.addr %s273, 8
        %s275 = scalar_lea.vmem %s2, %s274
      $region36: #{cpc_loss.2} parent=15 // pred_fallthru
        _
    $region16: #{cpc_loss.2} parent=5 // pred_fallthru
      _
    %p276 = scmp.le.s32.totalorder 1, %s10
    %p277 = scmp.lt.s32.totalorder %s10, 3
    %p278 = pnand %p276, %p277
    %p279 = pneg %p278
    // Predicated region
    $region37: #{cpc_loss.2} parent=5 // pred_check
      _
    $region38: #{cpc_loss.2} parent=5 // pred_check_branch
      %281 = sbr.rel (%p278) target = $region40
    $region39: #{cpc_loss.2} parent=5 // pred_region
      #allocation2 [shape = 'u8[24576]{0}', space=vmem, size = 0x6000, dematerialized = true, scoped, tag = 'FusionAdapter Buffer %fusion.1 = f32[3,2,16,32]{3,2,1,0:T(8,128)} fusion(%param_3.1), kind=kLoop, calls=%fused_computation.2.clone, metadata={op_name="jit(cpc_loss)/transpose" stack_frame_id=16}']
      %s282 = ssub.s32 %s10, 1
      %s283 = smul.u32 2, %s20
      %p284 = scmp.lt.s32.totalorder %s19, 1
      %s285 = scalar_select %p284, %s19, 1
      %p286 = scmp.lt.s32.totalorder %s283, 1
      %s287 = scalar_select %p286, %s283, 1
      %s288 = smul.addr %s285, 2
      %s289 = sadd.s32 %s287, %s288
      %s290 = smul.addr %s289, 8
      %s291 = scalar_lea.vmem %s3, %s290
      %p292 = pneg %p50
      %p293 = pneg %p47
      %s294 = smul.u32 2, %s20
      %p295 = scmp.lt.s32.totalorder %s19, 1
      %s296 = scalar_select %p295, %s19, 1
      %p297 = scmp.lt.s32.totalorder %s294, 1
      %s298 = scalar_select %p297, %s294, 1
      %s299 = smul.addr %s296, 2
      %s300 = sadd.s32 %s298, %s299
      %s301 = smul.addr %s300, 8
      %s302 = scalar_lea.vmem %s0, %s301
      %p303 = pneg %p78
      %p304 = pneg %p75
      %s305 = sadd.s32 %s20, 1
      %p306 = scmp.lt.s32.totalorder %s305, 0
      %s307 = scalar_select %p306, %s305, 0
      %s308 = smul.u32 2, %s307
      %p309 = scmp.lt.s32.totalorder %s19, 1
      %s310 = scalar_select %p309, %s19, 1
      %p311 = scmp.lt.s32.totalorder %s308, 1
      %s312 = scalar_select %p311, %s308, 1
      %s313 = smul.addr %s310, 2
      %s314 = sadd.s32 %s312, %s313
      %s315 = smul.addr %s314, 8
      %s316 = scalar_lea.vmem %s0, %s315
      %p317 = pneg %p112
      %p318 = pneg %p109
      %s319 = smul.u32 2, %s20
      %p320 = scmp.lt.s32.totalorder %s19, 1
      %s321 = scalar_select %p320, %s19, 1
      %p322 = scmp.lt.s32.totalorder %s319, 1
      %s323 = scalar_select %p322, %s319, 1
      %s324 = smul.addr %s321, 2
      %s325 = sadd.s32 %s323, %s324
      %s326 = smul.addr %s325, 8
      %s327 = scalar_lea.vmem %s1, %s326
      %p328 = pneg %p140
      %p329 = pneg %p137
      %p330 = scmp.lt.s32.totalorder %s19, 1
      %s331 = scalar_select %p330, %s19, 1
      %s332 = smul.addr %s331, 8
      %s333 = scalar_lea.vmem %s2, %s332
      %p334 = pneg %p166
      %p335 = pneg %p163
      %p336 = pneg %p192
      %p337 = pneg %p189
      %p338 = scmp.lt.s32.totalorder %s19, 1
      %s339 = scalar_select %p338, %s19, 1
      %s340 = scalar_lea.vmem %s4, %s339
      %s341 = smul.u32 2, %s20
      %p342 = scmp.lt.s32.totalorder %s19, 1
      %s343 = scalar_select %p342, %s19, 1
      %p344 = scmp.lt.s32.totalorder %s341, 1
      %s345 = scalar_select %p344, %s341, 1
      %s346 = smul.addr %s343, 2
      %s347 = sadd.s32 %s345, %s346
      %s348 = smul.addr %s347, 8
      %s349 = scalar_lea.vmem %s3, %s348
      %s350 = smul.u32 2, %s20
      %s351 = smul.u32 2, %s20
      %p352 = scmp.lt.s32.totalorder %s19, 1
      %s353 = scalar_select %p352, %s19, 1
      %p354 = scmp.lt.s32.totalorder %s351, 1
      %s355 = scalar_select %p354, %s351, 1
      %s356 = smul.addr %s353, 2
      %s357 = sadd.s32 %s355, %s356
      %s358 = smul.addr %s357, 8
      %s359 = scalar_lea.vmem %s0, %s358
      %s360 = smul.u32 2, %s20
      %s361 = sadd.s32 %s20, 1
      %p362 = scmp.lt.s32.totalorder %s361, 0
      %s363 = scalar_select %p362, %s361, 0
      %s364 = smul.u32 2, %s363
      %p365 = scmp.lt.s32.totalorder %s19, 1
      %s366 = scalar_select %p365, %s19, 1
      %p367 = scmp.lt.s32.totalorder %s364, 1
      %s368 = scalar_select %p367, %s364, 1
      %s369 = smul.addr %s366, 2
      %s370 = sadd.s32 %s368, %s369
      %s371 = smul.addr %s370, 8
      %s372 = scalar_lea.vmem %s0, %s371
      %s373 = sadd.s32 %s20, 1
      %p374 = scmp.lt.s32.totalorder %s373, 0
      %s375 = scalar_select %p374, %s373, 0
      %s376 = smul.u32 2, %s375
      %s377 = smul.u32 2, %s20
      %p378 = scmp.lt.s32.totalorder %s19, 1
      %s379 = scalar_select %p378, %s19, 1
      %p380 = scmp.lt.s32.totalorder %s377, 1
      %s381 = scalar_select %p380, %s377, 1
      %s382 = smul.addr %s379, 2
      %s383 = sadd.s32 %s381, %s382
      %s384 = smul.addr %s383, 8
      %s385 = scalar_lea.vmem %s1, %s384
      %s386 = smul.u32 2, %s20
      %p387 = scmp.lt.s32.totalorder %s19, 1
      %s388 = scalar_select %p387, %s19, 1
      %s389 = smul.addr %s388, 8
      %s390 = scalar_lea.vmem %s2, %s389
      %p391 = scmp.lt.s32.totalorder %s19, 1
      %s392 = scalar_select %p391, %s19, 1
      %s393 = scalar_lea.vmem %s4, %s392
      %v394 = vld [vmem:[%s349] sm:$0xff]
      %s396 = ssub.s32 256, 1
      %397 = vst [vmem:[#allocation2] sm:%s396] %v394
      %s398 = scalar_lea.vmem %s349, 8
      %v399 = vld [vmem:[%s398] sm:$0xff]
      %s400 = scalar_lea.vmem [#allocation2], 8
      %s402 = ssub.s32 256, 1
      %403 = vst [vmem:[%s400] sm:%s402] %v399
      %s404 = scalar_lea.vmem %s349, 32
      %v405 = vld [vmem:[%s404] sm:$0xff]
      %s406 = scalar_lea.vmem [#allocation2], 16
      %s408 = ssub.s32 256, 1
      %409 = vst [vmem:[%s406] sm:%s408] %v405
      %s410 = scalar_lea.vmem %s349, 40
      %v411 = vld [vmem:[%s410] sm:$0xff]
      %s412 = scalar_lea.vmem [#allocation2], 24
      %s414 = ssub.s32 256, 1
      %415 = vst [vmem:[%s412] sm:%s414] %v411
      %s416 = scalar_lea.vmem %s349, 64
      %v417 = vld [vmem:[%s416] sm:$0xff]
      %s418 = scalar_lea.vmem [#allocation2], 32
      %s420 = ssub.s32 256, 1
      %421 = vst [vmem:[%s418] sm:%s420] %v417
      %s422 = scalar_lea.vmem %s349, 72
      %v423 = vld [vmem:[%s422] sm:$0xff]
      %s424 = scalar_lea.vmem [#allocation2], 40
      %s426 = ssub.s32 256, 1
      %427 = vst [vmem:[%s424] sm:%s426] %v423
      %p428 = scmp.eq.s32.totalorder %s20, 0
      // Predicated region
      $region41: #{cpc_loss.2} parent=39 // pred_check
        %p429 = pneg %p428
      $region42: #{cpc_loss.2} parent=39 // pred_check_branch
        %431 = sbr.rel (%p429) target = $region44
      $region43: #{cpc_loss.2} parent=39 // pred_region
        %vm432 = vcmask 0
        %433 = vst.msk [vmem:[%s393] sm:$0x1] %vm432, 0.0
      $region44: #{cpc_loss.2} parent=39 // pred_fallthru
        _
      %v434 = vld [vmem:[%s385] sm:$0xff]
      %v435 = vld [vmem:[%s385 + $0x8] sm:$0xff]
      %v436 = vld [vmem:[%s359] sm:$0xff]
      %v437 = vld [vmem:[%s359 + $0x8] sm:$0xff]
      %v438 = vld [vmem:[%s372] sm:$0xff]
      %v439 = vld [vmem:[%s390] sm:$0xff]
      %s440 = smul.u32 %s20, 16
      %v441 = vlaneseq
      %v442 = vand.u32 %v441, 127
      %v443 = vstv %s440
      %v444 = vadd.s32 %v443, %v442
      %v445 = vld [vmem:[#allocation2] sm:$0xff]
      %v446 = vld [vmem:[#allocation2 + $0x8] sm:$0xff]
      %448 = vset.pattern.permute.xlu0 0
      %449 = vperm.xlu0 %448, %v434
      %v450 = vpop.permute.xlu0 %449
      %453 = vset.pattern.permute.xlu0 0
      %454 = vperm.xlu0 %453, %v435
      %v455 = vpop.permute.xlu0 %454
      %v457 = vmul.f32 %v445, %v450
      %v458 = vmul.f32 %v446, %v455
      %vm461 = vcmask 1046528
      %v462 = vrot.slane %v436, 1
      %v463 = vrot.slane %v437, 1
      %v464 = vsel %vm461, %v462, %v463
      %v468 = vrot.slane %v438, 1
      %v470 = vsel %vm461, %v463, %v468
      %v471 = vmul.f32 %v457, %v464
      %v472 = vmul.f32 %v458, %v470
      %vm473 = vcmask 261120
      %v474 = vsel %vm473, %v471, 0.0
      %475 = vadd.xlane.f32.xlu0 %v474
      %v476 = vpop.xlane.xlu0 %475
      %v477 = vsel %vm473, %v472, 0.0
      %478 = vadd.xlane.f32.xlu0 %v477
      %v479 = vpop.xlane.xlu0 %478
      %v481 = vsel %vm473, %v457, 0
      %v484 = vsel %vm473, %v458, 0
      %v487 = vsel %vm473, %v439, 0
      %489 = vmatpush.xpose.msra.mxu0 0.0
      %490 = vmatpush.xpose.msra.mxu0 0.0
      %491 = vmatpush.xpose.msra.mxu0 0.0
      %492 = vmatpush.xpose.msra.mxu0 0.0
      %493 = vmatpush.xpose.msra.mxu0 0.0
      %494 = vmatpush.xpose.msra.mxu0 0.0
      %495 = vmatpush.xpose.msra.mxu0 0.0
      %496 = vmatpush.xpose.msra.mxu0 0.0
      %497 = vmatpush.xpose.msra.mxu0 0.0
      %498 = vmatpush.xpose.msra.mxu0 0.0
      %499 = vmatpush.xpose.msra.mxu0 0.0
      %500 = vmatpush.xpose.msra.mxu0 0.0
      %501 = vmatpush.xpose.msra.mxu0 0.0
      %502 = vmatpush.xpose.msra.mxu0 0.0
      %503 = vmatpush.xpose.msra.mxu0 0.0
      %504 = vmatpush.xpose.msra.mxu0 %v487
      %505 = vmatmul.f32.gmra.mxu0 %v481
      %v506 = vpop.f32.mrf.mxu0
      %v507 = vadd.f32 0.0, %v506
      %508 = vmatmul.f32.gmra.mxu0 %v484
      %v509 = vpop.f32.mrf.mxu0
      %v510 = vadd.f32 0.0, %v509
      %511 = vdwg.mxu0
      %vm512 = vcmask 64512
      %v513 = vsel %vm512, %v507, -inf
      %514 = vmax.xlane.f32.xlu0 %v513
      %v515 = vpop.xlane.xlu0 %514
      %v516 = vsel %vm512, %v510, -inf
      %517 = vmax.xlane.f32.xlu0 %v516
      %v518 = vpop.xlane.xlu0 %517
      %v519 = vmax.f32 %v476, %v515
      %v520 = vmax.f32 %v479, %v518
      %v521 = vsub.f32 %v476, %v519
      %v522 = vsub.f32 %v479, %v520
      %v523 = vmul.f32 %v521, 1.442695
      %v524 = vpow.pop %v523
      %v525 = vmul.f32 %v522, 1.442695
      %v526 = vpow.pop %v525
      %v527 = vsub.f32 %v507, %v519
      %v528 = vsub.f32 %v510, %v520
      %v529 = vmul.f32 %v527, 1.442695
      %v530 = vpow.pop %v529
      %v531 = vmul.f32 %v528, 1.442695
      %v532 = vpow.pop %v531
      %v533 = vsel %vm512, %v530, 0.0
      %534 = vadd.xlane.f32.xlu0 %v533
      %v535 = vpop.xlane.xlu0 %534
      %v536 = vsel %vm512, %v532, 0.0
      %537 = vadd.xlane.f32.xlu0 %v536
      %v538 = vpop.xlane.xlu0 %537
      %v539 = vadd.f32 %v524, %v535
      %v540 = vadd.f32 %v526, %v538
      %v541 = vlog2.pop %v539
      %v542 = vmul.f32 %v541, 0.6931472
      %v543 = vlog2.pop %v540
      %v544 = vmul.f32 %v543, 0.6931472
      %v545 = vadd.f32 %v519, %v542
      %v546 = vadd.f32 %v520, %v544
      %v547 = vsub.f32 %v545, %v476
      %v548 = vsub.f32 %v546, %v479
      %vm549 = vcmp.lt.s32.totalorder %v444, 15
      %v552 = vperm.slane %v547, %v442
      %v553 = vadd.s32 %v442, 4294967288
      %v554 = vperm.slane %v548, %v553
      %vm555 = vcmask 130112
      %v556 = vsel %vm555, %v554, %v552
      %v558 = vsel %vm549, %v556, 0.0
      %vm559 = vcmask 122880
      %v560 = vsel %vm559, %v558, 0.0
      %561 = vadd.xlane.f32.xlu0 %v560
      %v562 = vpop.xlane.xlu0 %561
      %v563 = vrot.slane %v562, 4
      %v564 = vadd.f32 %v562, %v563
      %v565 = vrot.slane %v564, 2
      %v566 = vadd.f32 %v564, %v565
      %v567 = vrot.slane %v566, 1
      %v568 = vadd.f32 %v566, %v567
      %s569 = vtos %v568
      %s570 = smul.f32 %s569, 0.011111111
      %s571 = sadd.f32 %s570, 0.0
      %s572 = scalar_lea.vmem [#allocation2], 16
      %v573 = vld [vmem:[%s572] sm:$0xff]
      %v574 = vld [vmem:[%s572 + $0x8] sm:$0xff]
      %v575 = vmul.f32 %v573, %v450
      %v576 = vmul.f32 %v574, %v455
      %vm577 = vcmask 1045504
      %v578 = vrot.slane %v436, 2
      %v579 = vrot.slane %v437, 2
      %v580 = vsel %vm577, %v578, %v579
      %v583 = vrot.slane %v438, 2
      %v585 = vsel %vm577, %v579, %v583
      %v586 = vmul.f32 %v575, %v580
      %v587 = vmul.f32 %v576, %v585
      %v588 = vsel %vm473, %v586, 0.0
      %589 = vadd.xlane.f32.xlu0 %v588
      %v590 = vpop.xlane.xlu0 %589
      %v591 = vsel %vm473, %v587, 0.0
      %592 = vadd.xlane.f32.xlu0 %v591
      %v593 = vpop.xlane.xlu0 %592
      %v595 = vsel %vm473, %v575, 0
      %v598 = vsel %vm473, %v576, 0
      %600 = vmatpush.xpose.msra.mxu0 0.0
      %601 = vmatpush.xpose.msra.mxu0 0.0
      %602 = vmatpush.xpose.msra.mxu0 0.0
      %603 = vmatpush.xpose.msra.mxu0 0.0
      %604 = vmatpush.xpose.msra.mxu0 0.0
      %605 = vmatpush.xpose.msra.mxu0 0.0
      %606 = vmatpush.xpose.msra.mxu0 0.0
      %607 = vmatpush.xpose.msra.mxu0 0.0
      %608 = vmatpush.xpose.msra.mxu0 0.0
      %609 = vmatpush.xpose.msra.mxu0 0.0
      %610 = vmatpush.xpose.msra.mxu0 0.0
      %611 = vmatpush.xpose.msra.mxu0 0.0
      %612 = vmatpush.xpose.msra.mxu0 0.0
      %613 = vmatpush.xpose.msra.mxu0 0.0
      %614 = vmatpush.xpose.msra.mxu0 0.0
      %615 = vmatpush.xpose.msra.mxu0 %v487
      %616 = vmatmul.f32.gmra.mxu0 %v595
      %v617 = vpop.f32.mrf.mxu0
      %v618 = vadd.f32 0.0, %v617
      %619 = vmatmul.f32.gmra.mxu0 %v598
      %v620 = vpop.f32.mrf.mxu0
      %v621 = vadd.f32 0.0, %v620
      %622 = vdwg.mxu0
      %v623 = vsel %vm512, %v618, -inf
      %624 = vmax.xlane.f32.xlu0 %v623
      %v625 = vpop.xlane.xlu0 %624
      %v626 = vsel %vm512, %v621, -inf
      %627 = vmax.xlane.f32.xlu0 %v626
      %v628 = vpop.xlane.xlu0 %627
      %v629 = vmax.f32 %v590, %v625
      %v630 = vmax.f32 %v593, %v628
      %v631 = vsub.f32 %v590, %v629
      %v632 = vsub.f32 %v593, %v630
      %v633 = vmul.f32 %v631, 1.442695
      %v634 = vpow.pop %v633
      %v635 = vmul.f32 %v632, 1.442695
      %v636 = vpow.pop %v635
      %v637 = vsub.f32 %v618, %v629
      %v638 = vsub.f32 %v621, %v630
      %v639 = vmul.f32 %v637, 1.442695
      %v640 = vpow.pop %v639
      %v641 = vmul.f32 %v638, 1.442695
      %v642 = vpow.pop %v641
      %v643 = vsel %vm512, %v640, 0.0
      %644 = vadd.xlane.f32.xlu0 %v643
      %v645 = vpop.xlane.xlu0 %644
      %v646 = vsel %vm512, %v642, 0.0
      %647 = vadd.xlane.f32.xlu0 %v646
      %v648 = vpop.xlane.xlu0 %647
      %v649 = vadd.f32 %v634, %v645
      %v650 = vadd.f32 %v636, %v648
      %v651 = vlog2.pop %v649
      %v652 = vmul.f32 %v651, 0.6931472
      %v653 = vlog2.pop %v650
      %v654 = vmul.f32 %v653, 0.6931472
      %v655 = vadd.f32 %v629, %v652
      %v656 = vadd.f32 %v630, %v654
      %v657 = vsub.f32 %v655, %v590
      %v658 = vsub.f32 %v656, %v593
      %vm659 = vcmp.lt.s32.totalorder %v444, 14
      %v662 = vperm.slane %v657, %v442
      %v663 = vperm.slane %v658, %v553
      %v664 = vsel %vm555, %v663, %v662
      %v666 = vsel %vm659, %v664, 0.0
      %v667 = vsel %vm559, %v666, 0.0
      %668 = vadd.xlane.f32.xlu0 %v667
      %v669 = vpop.xlane.xlu0 %668
      %v670 = vrot.slane %v669, 4
      %v671 = vadd.f32 %v669, %v670
      %v672 = vrot.slane %v671, 2
      %v673 = vadd.f32 %v671, %v672
      %v674 = vrot.slane %v673, 1
      %v675 = vadd.f32 %v673, %v674
      %s676 = vtos %v675
      %s677 = smul.f32 %s676, 0.011904762
      %s678 = sadd.f32 %s571, %s677
      %s679 = scalar_lea.vmem [#allocation2], 32
      %v680 = vld [vmem:[%s679] sm:$0xff]
      %v681 = vld [vmem:[%s679 + $0x8] sm:$0xff]
      %v682 = vmul.f32 %v680, %v450
      %v683 = vmul.f32 %v681, %v455
      %vm684 = vcmask 1044480
      %v685 = vrot.slane %v436, 3
      %v686 = vrot.slane %v437, 3
      %v687 = vsel %vm684, %v685, %v686
      %v690 = vrot.slane %v438, 3
      %v692 = vsel %vm684, %v686, %v690
      %v693 = vmul.f32 %v682, %v687
      %v694 = vmul.f32 %v683, %v692
      %v695 = vsel %vm473, %v693, 0.0
      %696 = vadd.xlane.f32.xlu0 %v695
      %v697 = vpop.xlane.xlu0 %696
      %v698 = vsel %vm473, %v694, 0.0
      %699 = vadd.xlane.f32.xlu0 %v698
      %v700 = vpop.xlane.xlu0 %699
      %v702 = vsel %vm473, %v682, 0
      %v705 = vsel %vm473, %v683, 0
      %707 = vmatpush.xpose.msra.mxu0 0.0
      %708 = vmatpush.xpose.msra.mxu0 0.0
      %709 = vmatpush.xpose.msra.mxu0 0.0
      %710 = vmatpush.xpose.msra.mxu0 0.0
      %711 = vmatpush.xpose.msra.mxu0 0.0
      %712 = vmatpush.xpose.msra.mxu0 0.0
      %713 = vmatpush.xpose.msra.mxu0 0.0
      %714 = vmatpush.xpose.msra.mxu0 0.0
      %715 = vmatpush.xpose.msra.mxu0 0.0
      %716 = vmatpush.xpose.msra.mxu0 0.0
      %717 = vmatpush.xpose.msra.mxu0 0.0
      %718 = vmatpush.xpose.msra.mxu0 0.0
      %719 = vmatpush.xpose.msra.mxu0 0.0
      %720 = vmatpush.xpose.msra.mxu0 0.0
      %721 = vmatpush.xpose.msra.mxu0 0.0
      %722 = vmatpush.xpose.msra.mxu0 %v487
      %723 = vmatmul.f32.gmra.mxu0 %v702
      %v724 = vpop.f32.mrf.mxu0
      %v725 = vadd.f32 0.0, %v724
      %726 = vmatmul.f32.gmra.mxu0 %v705
      %v727 = vpop.f32.mrf.mxu0
      %v728 = vadd.f32 0.0, %v727
      %729 = vdwg.mxu0
      %v730 = vsel %vm512, %v725, -inf
      %731 = vmax.xlane.f32.xlu0 %v730
      %v732 = vpop.xlane.xlu0 %731
      %v733 = vsel %vm512, %v728, -inf
      %734 = vmax.xlane.f32.xlu0 %v733
      %v735 = vpop.xlane.xlu0 %734
      %v736 = vmax.f32 %v697, %v732
      %v737 = vmax.f32 %v700, %v735
      %v738 = vsub.f32 %v697, %v736
      %v739 = vsub.f32 %v700, %v737
      %v740 = vmul.f32 %v738, 1.442695
      %v741 = vpow.pop %v740
      %v742 = vmul.f32 %v739, 1.442695
      %v743 = vpow.pop %v742
      %v744 = vsub.f32 %v725, %v736
      %v745 = vsub.f32 %v728, %v737
      %v746 = vmul.f32 %v744, 1.442695
      %v747 = vpow.pop %v746
      %v748 = vmul.f32 %v745, 1.442695
      %v749 = vpow.pop %v748
      %v750 = vsel %vm512, %v747, 0.0
      %751 = vadd.xlane.f32.xlu0 %v750
      %v752 = vpop.xlane.xlu0 %751
      %v753 = vsel %vm512, %v749, 0.0
      %754 = vadd.xlane.f32.xlu0 %v753
      %v755 = vpop.xlane.xlu0 %754
      %v756 = vadd.f32 %v741, %v752
      %v757 = vadd.f32 %v743, %v755
      %v758 = vlog2.pop %v756
      %v759 = vmul.f32 %v758, 0.6931472
      %v760 = vlog2.pop %v757
      %v761 = vmul.f32 %v760, 0.6931472
      %v762 = vadd.f32 %v736, %v759
      %v763 = vadd.f32 %v737, %v761
      %v764 = vsub.f32 %v762, %v697
      %v765 = vsub.f32 %v763, %v700
      %vm766 = vcmp.lt.s32.totalorder %v444, 13
      %v769 = vperm.slane %v764, %v442
      %v770 = vperm.slane %v765, %v553
      %v771 = vsel %vm555, %v770, %v769
      %v773 = vsel %vm766, %v771, 0.0
      %v774 = vsel %vm559, %v773, 0.0
      %775 = vadd.xlane.f32.xlu0 %v774
      %v776 = vpop.xlane.xlu0 %775
      %v777 = vrot.slane %v776, 4
      %v778 = vadd.f32 %v776, %v777
      %v779 = vrot.slane %v778, 2
      %v780 = vadd.f32 %v778, %v779
      %v781 = vrot.slane %v780, 1
      %v782 = vadd.f32 %v780, %v781
      %s783 = vtos %v782
      %s784 = smul.f32 %s783, 0.012820513
      %s785 = sadd.f32 %s678, %s784
      %v786 = vld [vmem:[%s393] sm:$0x1]
      %v787 = vstv %s785
      %v788 = vadd.f32 %v786, %v787
      %vm789 = vcmask 0
      %790 = vst.msk [vmem:[%s393] sm:$0x1] %vm789, %v788
      %p791 = scmp.lt.s32.totalorder %s19, 1
      %s792 = scalar_select %p791, %s19, 1
      %s793 = scalar_lea.vmem %s4, %s792
      // Predicated region
      $region45: #{cpc_loss.2} parent=39 // pred_check
        %p794 = pneg %p189
      $region46: #{cpc_loss.2} parent=39 // pred_check_branch
        %796 = sbr.rel (%p794) target = $region48
      $region47: #{cpc_loss.2} parent=39 // pred_region
        _
      $region48: #{cpc_loss.2} parent=39 // pred_fallthru
        _
    $region40: #{cpc_loss.2} parent=5 // pred_fallthru
      _
    %p797 = scmp.le.s32.totalorder 2, %s10
    // Predicated region
    $region49: #{cpc_loss.2} parent=5 // pred_check
      %p798 = pneg %p797
    $region50: #{cpc_loss.2} parent=5 // pred_check_branch
      %800 = sbr.rel (%p798) target = $region52
    $region51: #{cpc_loss.2} parent=5 // pred_region
      %s801 = ssub.s32 %s10, 2
      // Predicated region
      $region53: #{cpc_loss.2} parent=51 // pred_check
        %p802 = pneg %p195
      $region54: #{cpc_loss.2} parent=51 // pred_check_branch
        %804 = sbr.rel (%p802) target = $region56
      $region55: #{cpc_loss.2} parent=51 // pred_region
        %p805 = scmp.lt.s32.totalorder %s21, 1
        %s806 = scalar_select %p805, %s21, 1
        %s807 = scalar_lea.vmem %s4, %s806
      $region56: #{cpc_loss.2} parent=51 // pred_fallthru
        _
    $region52: #{cpc_loss.2} parent=5 // pred_fallthru
      _
  $region6: #{cpc_loss.2} parent=0 // loop_footer
    %s14 = sadd.s32 1, %s10
  $region7: #{cpc_loss.2} parent=0 // loop_footer_branch
    %9 = sbr.rel target = $region3
  $region8: #{cpc_loss.2} parent=0 // loop_exit
    _

</llo_original>
